<compile_context>
chip_gen: v5e
topology: v5e:2x2
jax: 0.10.0
libtpu: 0.0.40
codegen_flags: <defaults>
</compile_context>

<pallas_src>
import functools

import jax
import jax.numpy as jnp
from jax.experimental import pallas as pl
from jax.experimental.pallas import tpu as pltpu


def _round_up(a: int, b: int) -> int:
    return (a + b - 1) // b * b


def _proj_logsoftmax_kernel(x_ref, w_ref, b_ref, o_ref):
    """Grid = (row_tiles, vocab_tiles); vocab axis is innermost ("arbitrary").

    Per step: one MXU matmul (tm, D) x (D, tv) with f32 accumulation, bias add,
    and the raw logits are written into the VMEM-resident output slab.  On the
    last vocab step a numerically-stable log-softmax runs over the whole slab
    (exp/log land on the otherwise-idle EUP slot, so the epilogue is nearly
    free once the row tile is large enough to keep the MXU busy).
    """
    j = pl.program_id(1)
    n_v = pl.num_programs(1)

    # MXU: bf16 (or caller-chosen) inputs, always f32 accumulation.
    logits = jnp.dot(x_ref[...], w_ref[...], preferred_element_type=jnp.float32)
    logits = logits + b_ref[...]                       # (tm, tv) f32
    o_ref[j] = logits                                  # slab stays resident across j

    @pl.when(j == n_v - 1)
    def _():
        slab = o_ref[...]                              # (n_v, tm, tv) f32
        m = jnp.max(jnp.max(slab, axis=2, keepdims=True), axis=0, keepdims=True)
        shifted = slab - m
        l = jnp.sum(jnp.sum(jnp.exp(shifted), axis=2, keepdims=True),
                    axis=0, keepdims=True)             # (1, tm, 1)
        o_ref[...] = shifted - jnp.log(l)


@functools.partial(jax.jit, static_argnames=("tm", "tv", "matmul_dtype"))
def projection_layer(x, weight, bias, *, tm=256, tv=None,
                     matmul_dtype=jnp.bfloat16):
    """x: [B, S, D], weight: [D, V], bias: [V] -> f32 log-probs [B, S, V].

    tm: row tile (MXU-aligned; default 256, auto-clamped/padded for small B*S).
    tv: vocab tile (multiple of 128). None -> min(round_up(V, 128), 2048).
    matmul_dtype: dtype the MXU sees (bf16 default; accumulation stays f32).
    """
    B, S, D = x.shape
    V = weight.shape[1]
    M = B * S

    # ---- row tiling: large MXU-aligned tile, padded rows for ragged M ----
    tm_eff = max(8, min(_round_up(tm, 8), _round_up(M, 8)))
    Mp = _round_up(M, tm_eff)
    n_rows = Mp // tm_eff

    # ---- vocab tiling: lane-dense multiples of 128 (weight streamed per tile) ----
    tv_eff = min(_round_up(V, 128), 2048) if tv is None else _round_up(tv, 128)
    Vp = _round_up(V, tv_eff)
    n_v = Vp // tv_eff

    # ---- pad + cast operands ----
    x2 = x.reshape(M, D)
    if Mp != M:
        x2 = jnp.pad(x2, ((0, Mp - M), (0, 0)))
    w2 = weight
    b2 = bias.reshape(1, V).astype(jnp.float32)
    if Vp != V:
        w2 = jnp.pad(w2, ((0, 0), (0, Vp - V)))
        # Huge negative bias on padded vocab lanes -> exp underflows to 0,
        # so padding never perturbs the softmax over the real vocabulary.
        b2 = jnp.pad(b2, ((0, 0), (0, Vp - V)), constant_values=-1e30)
    x2 = x2.astype(matmul_dtype)        # halves HBM traffic, doubles MXU rate
    w2 = w2.astype(matmul_dtype)

    # ---- explicit VMEM budget: double-buffered inputs + resident output slab ----
    in_bytes = jnp.dtype(matmul_dtype).itemsize
    vmem_est = (2 * tm_eff * D * in_bytes          # x row tile (double-buffered)
                + 2 * D * tv_eff * in_bytes        # weight vocab tile (double-buffered)
                + 2 * tv_eff * 4                   # bias vocab tile
                + 2 * n_v * tm_eff * tv_eff * 4)   # (n_v, tm, tv) f32 logits/output slab
    vmem_limit = int(min(max(2 * vmem_est, 32 * 1024 * 1024), 64 * 1024 * 1024))
    # TODO(synk): if even a (tm, Vp) f32 logits slab cannot fit 64 MiB VMEM (v7x)
    # at tm=128, a two-pass / fix-up online log-softmax over V would be required.

    out = pl.pallas_call(
        _proj_logsoftmax_kernel,
        out_shape=jax.ShapeDtypeStruct((n_v, Mp, tv_eff), jnp.float32),
        grid_spec=pltpu.PrefetchScalarGridSpec(
            num_scalar_prefetch=0,
            grid=(n_rows, n_v),                         # rows parallel, vocab innermost
            in_specs=[
                pl.BlockSpec((tm_eff, D), lambda i, j: (i, 0)),    # activation row tile
                pl.BlockSpec((D, tv_eff), lambda i, j: (0, j)),    # weight vocab tile
                pl.BlockSpec((1, tv_eff), lambda i, j: (0, j)),    # bias vocab tile
            ],
            out_specs=pl.BlockSpec((n_v, tm_eff, tv_eff), lambda i, j: (0, i, 0)),
        ),
        compiler_params=pltpu.CompilerParams(
            dimension_semantics=("parallel", "arbitrary"),   # row axis shards across TCs (v7x)
            vmem_limit_bytes=vmem_limit,
        ),
    )(x2, w2, b2)

    # (n_v, Mp, tv) -> (Mp, Vp): vocab-tile index is adjacent-major to the lane
    # index, so this is pure layout plumbing (a no-op when n_v == 1).
    out = jnp.transpose(out, (1, 0, 2)).reshape(Mp, Vp)[:M, :V]
    return out.reshape(B, S, V)


if __name__ == "__main__":
    key = jax.random.PRNGKey(0)

    def make_case(k, B, S, D, V):
        kx, kw, kb = jax.random.split(k, 3)
        bound = 1.0 / (D ** 0.5)           # nn.Linear default init range
        weight = jax.random.uniform(kw, (D, V), jnp.float32, -bound, bound)
        bias = jax.random.uniform(kb, (V,), jnp.float32, -bound, bound)
        x = jax.random.normal(kx, (B, S, D), jnp.float32)
        return x, weight, bias

    def ref_bf16(x, weight, bias):
        # Same bf16-in / f32-accumulate matmul as the kernel, pure XLA.
        logits = jnp.einsum("bsd,dv->bsv", x.astype(jnp.bfloat16),
                            weight.astype(jnp.bfloat16),
                            preferred_element_type=jnp.float32) + bias
        return jax.nn.log_softmax(logits, axis=-1)

    def ref_f32(x, weight, bias):
        return jax.nn.log_softmax(jnp.einsum("bsd,dv->bsv", x, weight) + bias, axis=-1)

    k1, k2 = jax.random.split(key)

    # Case 1: toy shapes consistent with the module (d_model=32, vocab=128):
    # single row tile, single vocab tile, one grid step.
    x, w, b = make_case(k1, 2, 8, 32, 128)
    out = jax.block_until_ready(projection_layer(x, w, b))
    assert out.shape == (2, 8, 128) and out.dtype == jnp.float32
    assert jnp.allclose(out, ref_bf16(x, w, b), atol=1e-4, rtol=1e-4)
    assert jnp.allclose(out, ref_f32(x, w, b), atol=5e-2, rtol=5e-2)

    # Case 2: ragged shapes exercising row padding (26 -> 32), vocab tiling
    # (tv=128 -> 3 vocab tiles) and vocab padding (300 -> 384).
    x, w, b = make_case(k2, 2, 13, 32, 300)
    out = jax.block_until_ready(projection_layer(x, w, b, tv=128))
    assert out.shape == (2, 13, 300) and out.dtype == jnp.float32
    assert jnp.allclose(out, ref_bf16(x, w, b), atol=1e-4, rtol=1e-4)
    assert jnp.allclose(out, ref_f32(x, w, b), atol=5e-2, rtol=5e-2)

    print("KERNEL_OK")
</pallas_src>

<mosaic_0001>
module attributes {stable_mosaic.version = 11 : i64} {
  func.func @_proj_logsoftmax_kernel(%arg0: i32, %arg1: i32, %arg2: memref<16x32xbf16, #tpu.memory_space<vmem>>, %arg3: memref<32x128xbf16, #tpu.memory_space<vmem>>, %arg4: memref<1x128xf32, #tpu.memory_space<vmem>>, %arg5: memref<1x16x128xf32, #tpu.memory_space<vmem>>) attributes {dimension_semantics = [#tpu.dimension_semantics<parallel>, #tpu.dimension_semantics<arbitrary>], iteration_bounds = array<i64: 1, 1>, scalar_prefetch = 0 : i64, scratch_operands = 0 : i64, tpu.core_type = #tpu.core_type<tc>, window_params = [{transform_indices = @transform_0, window_bounds = array<i64: 16, 32>}, {transform_indices = @transform_1, window_bounds = array<i64: 32, 128>}, {transform_indices = @transform_2, window_bounds = array<i64: 1, 128>}, {transform_indices = @transform_3, window_bounds = array<i64: 1, 16, 128>}]} {
    %c0 = arith.constant 0 : index
    %c0_0 = arith.constant 0 : index
    %0 = vector.load %arg2[%c0, %c0_0] : memref<16x32xbf16, #tpu.memory_space<vmem>>, vector<16x32xbf16>
    %c0_1 = arith.constant 0 : index
    %c0_2 = arith.constant 0 : index
    %1 = vector.load %arg3[%c0_1, %c0_2] : memref<32x128xbf16, #tpu.memory_space<vmem>>, vector<32x128xbf16>
    %cst = arith.constant dense<0.000000e+00> : vector<16x128xf32>
    %2 = tpu.matmul %0, %1, %cst {dimension_numbers = #tpu.dot_dimension_numbers<[1], [0], [0], [1], [0, 0, 1, 1], [], []>} : vector<16x32xbf16>, vector<32x128xbf16>, vector<16x128xf32> -> vector<16x128xf32>
    %c0_3 = arith.constant 0 : index
    %c0_4 = arith.constant 0 : index
    %3 = vector.load %arg4[%c0_3, %c0_4] : memref<1x128xf32, #tpu.memory_space<vmem>>, vector<1x128xf32>
    %4 = vector.broadcast %3 : vector<1x128xf32> to vector<16x128xf32>
    %5 = arith.addf %2, %4 : vector<16x128xf32>
    %6 = arith.index_cast %arg1 : i32 to index
    %c0_5 = arith.constant 0 : index
    %c0_6 = arith.constant 0 : index
    %7 = vector.load %arg5[%6, %c0_5, %c0_6] : memref<1x16x128xf32, #tpu.memory_space<vmem>>, vector<1x16x128xf32>
    %8 = vector.shape_cast %7 : vector<1x16x128xf32> to vector<16x128xf32>
    %9 = vector.shape_cast %5 : vector<16x128xf32> to vector<1x16x128xf32>
    tpu.vector_store %arg5[%6, %c0_5, %c0_6], %9 {strides = array<i32>} : memref<1x16x128xf32, #tpu.memory_space<vmem>>, vector<1x16x128xf32>,
    %c0_i32 = arith.constant 0 : i32
    %10 = arith.cmpi eq, %arg1, %c0_i32 : i32
    %11 = arith.extui %10 : i1 to i32
    %c0_i32_7 = arith.constant 0 : i32
    %12 = arith.cmpi ne, %11, %c0_i32_7 : i32
    scf.if %12 {
      %c0_8 = arith.constant 0 : index
      %c0_9 = arith.constant 0 : index
      %c0_10 = arith.constant 0 : index
      %13 = vector.load %arg5[%c0_8, %c0_9, %c0_10] : memref<1x16x128xf32, #tpu.memory_space<vmem>>, vector<1x16x128xf32>
      %cst_11 = arith.constant dense<0xFF800000> : vector<1x16xf32>
      %14 = vector.multi_reduction <maximumf>, %13, %cst_11 [2] : vector<1x16x128xf32> to vector<1x16xf32>
      %15 = vector.shape_cast %14 : vector<1x16xf32> to vector<1x16x1xf32>
      %cst_12 = arith.constant dense<0xFF800000> : vector<16x1xf32>
      %16 = vector.multi_reduction <maximumf>, %15, %cst_12 [0] : vector<1x16x1xf32> to vector<16x1xf32>
      %17 = vector.shape_cast %16 : vector<16x1xf32> to vector<1x16x1xf32>
      %18 = vector.broadcast %17 : vector<1x16x1xf32> to vector<1x16x128xf32>
      %19 = arith.subf %13, %18 : vector<1x16x128xf32>
      %20 = math.exp %19 : vector<1x16x128xf32>
      %cst_13 = arith.constant dense<0.000000e+00> : vector<1x16xf32>
      %21 = vector.multi_reduction <add>, %20, %cst_13 [2] : vector<1x16x128xf32> to vector<1x16xf32>
      %22 = vector.shape_cast %21 : vector<1x16xf32> to vector<1x16x1xf32>
      %cst_14 = arith.constant dense<0.000000e+00> : vector<16x1xf32>
      %23 = vector.multi_reduction <add>, %22, %cst_14 [0] : vector<1x16x1xf32> to vector<16x1xf32>
      %24 = vector.shape_cast %23 : vector<16x1xf32> to vector<1x16x1xf32>
      %25 = math.log %24 : vector<1x16x1xf32>
      %26 = vector.broadcast %25 : vector<1x16x1xf32> to vector<1x16x128xf32>
      %27 = arith.subf %19, %26 : vector<1x16x128xf32>
      %c0_15 = arith.constant 0 : index
      %c0_16 = arith.constant 0 : index
      %c0_17 = arith.constant 0 : index
      %28 = vector.load %arg5[%c0_15, %c0_16, %c0_17] : memref<1x16x128xf32, #tpu.memory_space<vmem>>, vector<1x16x128xf32>
      tpu.vector_store %arg5[%c0_15, %c0_16, %c0_17], %27 {strides = array<i32>} : memref<1x16x128xf32, #tpu.memory_space<vmem>>, vector<1x16x128xf32>,
    } else {
    }
    return
  }
  func.func @transform_0(%arg0: i32, %arg1: i32) -> (i32, i32) {
    %c0_i32 = arith.constant 0 : i32
    %c0_i32_0 = arith.constant 0 : i32
    return %arg0, %c0_i32 : i32, i32
  }
  func.func @transform_1(%arg0: i32, %arg1: i32) -> (i32, i32) {
    %c0_i32 = arith.constant 0 : i32
    %c0_i32_0 = arith.constant 0 : i32
    return %c0_i32, %arg1 : i32, i32
  }
  func.func @transform_2(%arg0: i32, %arg1: i32) -> (i32, i32) {
    %c0_i32 = arith.constant 0 : i32
    %c0_i32_0 = arith.constant 0 : i32
    return %c0_i32, %arg1 : i32, i32
  }
  func.func @transform_3(%arg0: i32, %arg1: i32) -> (i32, i32, i32) {
    %c0_i32 = arith.constant 0 : i32
    %c0_i32_0 = arith.constant 0 : i32
    %c0_i32_1 = arith.constant 0 : i32
    return %c0_i32, %arg0, %c0_i32_0 : i32, i32, i32
  }
}

</mosaic_0001>

<llo_original>
// kernel: projection_layer.1
$region0: #{projection_layer.1}
  #allocation0 [shape = 'u32[]', space=smem, size = 0x4, offset = 0x4, fixed_abs, tag = 'smem constant byte address 0x4 - core index']
  #allocation1 [shape = 'u32[72,128]{1,0:T(1,128)}', space=vmem, size = 0x9000, scoped, tag = 'internal scratch']
  %s0 = inlined_call_operand.vmem [shape: bf16[16,32], index: 0, kind: input, shape index: {}]
  %s1 = inlined_call_operand.vmem [shape: bf16[32,128], index: 1, kind: input, shape index: {}]
  %s2 = inlined_call_operand.vmem [shape: f32[1,128], index: 2, kind: input, shape index: {}]
  %s3 = inlined_call_operand.hbm [shape: f32[1,16,128], index: 3, kind: output, shape index: {}]
  %s4 = sld [smem:[#allocation0]]
  $region26: #{projection_layer.1} parent=0
    _
  %s6 = ssub.s32 1, %s4
  %s7 = scalar_select 0, %s6, %s4
  $region1: #{projection_layer.1} parent=0
    #allocation2 [shape = 'u8[8192]{0}', space=vmem, size = 0x2000, scoped, tag = 'output window, operand 0, single buffered']
    #allocation3 [shape = 's32[1]{0}', space=sflag, size = 0x4, scoped, tag = 'scoped memory for projection_layer.1']
    %8 = vsyncpa [#allocation3], 0
    // Predicated region
    $region2: #{projection_layer.1} parent=1 // pred_check
      _
    $region3: #{projection_layer.1} parent=1 // pred_check_branch
      %10 = sbr.rel (0) target = $region5
    $region4: #{projection_layer.1} parent=1 // pred_region
      _
    $region5: #{projection_layer.1} parent=1 // pred_fallthru
      _
    // Predicated region
    $region6: #{projection_layer.1} parent=1 // pred_check
      _
    $region7: #{projection_layer.1} parent=1 // pred_check_branch
      %12 = sbr.rel (0) target = $region9
    $region8: #{projection_layer.1} parent=1 // pred_region
      _
    $region9: #{projection_layer.1} parent=1 // pred_fallthru
      _
    // Predicated region
    $region10: #{projection_layer.1} parent=1 // pred_check
      _
    $region11: #{projection_layer.1} parent=1 // pred_check_branch
      %14 = sbr.rel (0) target = $region13
    $region12: #{projection_layer.1} parent=1 // pred_region
      _
    $region13: #{projection_layer.1} parent=1 // pred_fallthru
      _
    %v16 = vld [vmem:[%s0] sm:$0xf]
    %v17 = vld [vmem:[%s0 + $0x4] sm:$0xf]
    %v18 = vld [vmem:[%s1] sm:$0xf]
    %v19 = vld [vmem:[%s1 + $0x4] sm:$0xf]
    %v20 = vld [vmem:[%s1 + $0x8] sm:$0xf]
    %v21 = vld [vmem:[%s1 + $0xc] sm:$0xf]
    %v22 = vld [vmem:[%s2] sm:$0x1]
    %v24 = vperm.slane %v22, 0
    %v28 = vunpack.c.l.b16 %v16
    %v29 = vunpack.c.l.b16 %v17
    %v30 = vpack.c.b16 %v29, %v28
    %v35 = vunpack.c.l.b16 %v18
    %v36 = vunpack.c.l.b16 %v19
    %v37 = vunpack.c.l.b16 %v20
    %v38 = vunpack.c.l.b16 %v21
    %v39 = vpack.c.b16 %v36, %v35
    %v40 = vpack.c.b16 %v38, %v37
    %vm43 = vcmask 261120
    %v45 = vsel %vm43, %v30, 0
    %47 = vmatpush.bf16.msra.mxu0 0
    %48 = vmatpush.bf16.msra.mxu0 0
    %49 = vmatpush.bf16.msra.mxu0 0
    %50 = vmatpush.bf16.msra.mxu0 0
    %51 = vmatpush.bf16.msra.mxu0 0
    %52 = vmatpush.bf16.msra.mxu0 0
    %53 = vmatpush.bf16.msra.mxu0 %v40
    %54 = vmatpush.bf16.msra.mxu0 %v39
    %55 = vmatmul.bf16.gmra.mxu0 %v45
    %v56 = vpop.f32.mrf.mxu0
    %v57 = vadd.f32 %v24, %v56
    %v58 = vpop.f32.mrf.mxu0
    %v59 = vadd.f32 %v24, %v58
    %60 = vdwg.mxu0
    %s61 = smul.u32 0, 16
    %s62 = scalar_lea.vmem [#allocation2], %s61
    %63 = vst [vmem:[%s62] sm:$0xff] %v57
    %64 = vst [vmem:[%s62 + $0x8] sm:$0xff] %v59
    %p65 = scmp.eq.s32.totalorder 0, 0
    // Predicated region
    $region14: #{projection_layer.1} parent=1 // pred_check
      %p66 = pneg %p65
    $region15: #{projection_layer.1} parent=1 // pred_check_branch
      %68 = sbr.rel (%p66) target = $region17
    $region16: #{projection_layer.1} parent=1 // pred_region
      %v69 = vld [vmem:[#allocation2] sm:$0xff]
      %v70 = vld [vmem:[#allocation2 + $0x8] sm:$0xff]
      %71 = vmax.xlane.f32.xlu0 %v69
      %v72 = vpop.xlane.xlu0 %71
      %73 = vmax.xlane.f32.xlu0 %v70
      %v74 = vpop.xlane.xlu0 %73
      %v75 = vsub.f32 %v69, %v72
      %v76 = vsub.f32 %v70, %v74
      %v77 = vmul.f32 %v75, 1.442695
      %v78 = vpow.pop %v77
      %v79 = vmul.f32 %v76, 1.442695
      %v80 = vpow.pop %v79
      %81 = vadd.xlane.f32.xlu0 %v78
      %v82 = vpop.xlane.xlu0 %81
      %83 = vadd.xlane.f32.xlu0 %v80
      %v84 = vpop.xlane.xlu0 %83
      %v85 = vadd.f32 %v82, 0.0
      %v86 = vadd.f32 %v84, 0.0
      %v87 = vlog2.pop %v85
      %v88 = vmul.f32 %v87, 0.6931472
      %v89 = vlog2.pop %v86
      %v90 = vmul.f32 %v89, 0.6931472
      %v91 = vsub.f32 %v75, %v88
      %v92 = vsub.f32 %v76, %v90
      %93 = vst [vmem:[#allocation2] sm:$0xff] %v91
      %94 = vst [vmem:[#allocation2 + $0x8] sm:$0xff] %v92
    $region17: #{projection_layer.1} parent=1 // pred_fallthru
      _
    // Predicated region
    $region18: #{projection_layer.1} parent=1 // pred_check
      _
    $region19: #{projection_layer.1} parent=1 // pred_check_branch
      %96 = sbr.rel (0) target = $region21
    $region20: #{projection_layer.1} parent=1 // pred_region
      %98 = vsyncadd [#allocation3], 0
      %s99 = sshll.u32 [#allocation2], 4
      %s100 = int_to_ptr.vmem [resolvable:$true] %s99
      %s101 = sshll.u32 %s3, 4
      %s102 = int_to_ptr.hbm [resolvable:$true] %s101
      %107 = dma.vmem_to_hbm [thread:$0]  %s100, 256, %s102, [#allocation3], 128, 128, 8
    $region21: #{projection_layer.1} parent=1 // pred_fallthru
      _
    // Predicated region
    $region22: #{projection_layer.1} parent=1 // pred_check
      _
    $region23: #{projection_layer.1} parent=1 // pred_check_branch
      %109 = sbr.rel (0) target = $region25
    $region24: #{projection_layer.1} parent=1 // pred_region
      %111 = dma.done [#allocation3], 256
    $region25: #{projection_layer.1} parent=1 // pred_fallthru
      _
    %112 = vsyncpa [#allocation3], 1

</llo_original>
